<compile_context>
chip_gen: v7x
topology: tpu7x:2x2x1
jax: 0.10.0
libtpu: 0.0.40
codegen_flags: <defaults>
</compile_context>

<pallas_src>
import functools

import jax
import jax.numpy as jnp
from jax.experimental import pallas as pl
from jax.experimental.pallas import tpu as pltpu

_MIB = 1024 * 1024


def _round_up(x, m):
    return (x + m - 1) // m * m


def _vmem_capacity_bytes():
    try:
        cap = getattr(pltpu.get_tpu_info(), "vmem_capacity_bytes", None)
        if cap:
            return int(cap)
    except Exception:
        pass
    return 64 * _MIB  # conservative default (v7x per-TC VMEM)


def prepare_params(params, eps=1e-5):
    """Fold BatchNorm1d (eval) into the Linears, pad to lane-dense shapes, cast to bf16.

    One-time cost (cache the result in serving); kernel then does relu(x @ w' + b').
    """
    (w1, b1, g1, be1, rm1, rv1,
     w2, b2, g2, be2, rm2, rv2,
     w3, b3) = params

    s1 = g1 / jnp.sqrt(rv1 + eps)
    t1 = be1 - rm1 * s1
    s2 = g2 / jnp.sqrt(rv2 + eps)
    t2 = be2 - rm2 * s2
    w1f, b1f = w1 * s1[None, :], b1 * s1 + t1
    w2f, b2f = w2 * s2[None, :], b2 * s2 + t2

    F, H1 = w1.shape
    H2 = w2.shape[1]
    L = w3.shape[1]
    Fp, H1p, H2p, Lp = (_round_up(d, 128) for d in (F, H1, H2, L))

    # Zero-padded bf16 weights (zeros in the pad region keep semantics exact).
    w1p = jnp.zeros((Fp, H1p), jnp.bfloat16).at[:F, :H1].set(w1f.astype(jnp.bfloat16))
    w2p = jnp.zeros((H1p, H2p), jnp.bfloat16).at[:H1, :H2].set(w2f.astype(jnp.bfloat16))
    w3p = jnp.zeros((H2p, Lp), jnp.bfloat16).at[:H2, :L].set(w3.astype(jnp.bfloat16))

    # Biases as sublane-aligned (8, Np) f32; data lives in row 0.
    b1p = jnp.zeros((8, H1p), jnp.float32).at[0, :H1].set(b1f)
    b2p = jnp.zeros((8, H2p), jnp.float32).at[0, :H2].set(b2f)
    b3p = jnp.zeros((8, Lp), jnp.float32).at[0, :L].set(b3)

    return dict(w1p=w1p, w2p=w2p, w3p=w3p, b1p=b1p, b2p=b2p, b3p=b3p,
                dims=(F, H1, H2, L), pdims=(Fp, H1p, H2p, Lp))


# ---------------------------------------------------------------------------
# Fused path: weights VMEM-resident, grid over batch tiles.
# ---------------------------------------------------------------------------
def _fused_kernel(x_ref, w1_ref, w2_ref, w3_ref, b1_ref, b2_ref, b3_ref, o_ref):
    h1 = jnp.dot(x_ref[...], w1_ref[...], preferred_element_type=jnp.float32)
    h1 = jnp.maximum(h1 + b1_ref[0:1, :], 0.0).astype(jnp.bfloat16)
    h2 = jnp.dot(h1, w2_ref[...], preferred_element_type=jnp.float32)
    h2 = jnp.maximum(h2 + b2_ref[0:1, :], 0.0).astype(jnp.bfloat16)
    out = jnp.dot(h2, w3_ref[...], preferred_element_type=jnp.float32)
    o_ref[...] = out + b3_ref[0:1, :]


def _fused_forward(xp, prep, TM, Bp, vmem_limit):
    Fp, H1p, H2p, Lp = prep["pdims"]

    def call(single_buffer):
        kw = dict(pipeline_mode=pl.Buffered(1)) if single_buffer else {}

        def const_spec(shape):
            # Constant operands: stay VMEM-resident, DMA'd once, single-buffered.
            return pl.BlockSpec(shape, lambda i: (0, 0), **kw)

        return pl.pallas_call(
            _fused_kernel,
            out_shape=jax.ShapeDtypeStruct((Bp, Lp), jnp.float32),
            grid=(Bp // TM,),
            in_specs=[
                pl.BlockSpec((TM, Fp), lambda i: (i, 0)),   # x: tiled over batch
                const_spec((Fp, H1p)),                      # weights: resident
                const_spec((H1p, H2p)),
                const_spec((H2p, Lp)),
                const_spec((8, H1p)),                       # biases
                const_spec((8, H2p)),
                const_spec((8, Lp)),
            ],
            out_specs=pl.BlockSpec((TM, Lp), lambda i: (i, 0)),
            compiler_params=pltpu.CompilerParams(
                dimension_semantics=("parallel",),
                vmem_limit_bytes=vmem_limit,
            ),
        )(xp, prep["w1p"], prep["w2p"], prep["w3p"],
          prep["b1p"], prep["b2p"], prep["b3p"])

    try:
        return call(True)
    except Exception:
        # pipeline_mode / Buffered(1) unsupported on this jax: use default buffering.
        return call(False)


# ---------------------------------------------------------------------------
# Fallback path: per-layer K/N-tiled matmul with f32 VMEM accumulator (P1 + P3).
# Used when the resident-weight footprint exceeds the generation's VMEM budget.
# ---------------------------------------------------------------------------
def _linear_kernel(x_ref, w_ref, b_ref, o_ref, acc_ref, *, relu):
    @pl.when(pl.program_id(2) == 0)
    def _():
        acc_ref[...] = jnp.zeros_like(acc_ref)

    acc_ref[...] += jnp.dot(x_ref[...], w_ref[...], preferred_element_type=jnp.float32)

    @pl.when(pl.program_id(2) == pl.num_programs(2) - 1)
    def _():
        r = acc_ref[...] + b_ref[0:1, :]
        if relu:
            r = jnp.maximum(r, 0.0)
        o_ref[...] = r.astype(o_ref.dtype)


def _pick_tile(dim, max_tile, granule):
    t = min(max_tile, dim)
    t = max(granule, (t // granule) * granule)
    while dim % t != 0:
        t -= granule
    return t


def _tiled_linear(x, w, b, *, relu, out_dtype, vmem_limit):
    M, K = x.shape
    N = w.shape[1]
    tm = _pick_tile(M, 256, 16)
    tk = _pick_tile(K, 512, 128)
    tn = _pick_tile(N, 512, 128)
    return pl.pallas_call(
        functools.partial(_linear_kernel, relu=relu),
        out_shape=jax.ShapeDtypeStruct((M, N), out_dtype),
        grid=(M // tm, N // tn, K // tk),
        in_specs=[
            pl.BlockSpec((tm, tk), lambda i, j, k: (i, k)),
            pl.BlockSpec((tk, tn), lambda i, j, k: (k, j)),
            pl.BlockSpec((8, tn), lambda i, j, k: (0, j)),
        ],
        out_specs=pl.BlockSpec((tm, tn), lambda i, j, k: (i, j)),
        scratch_shapes=[pltpu.VMEM((tm, tn), jnp.float32)],
        compiler_params=pltpu.CompilerParams(
            dimension_semantics=("parallel", "parallel", "arbitrary"),
            vmem_limit_bytes=vmem_limit,
        ),
    )(x, w, b)


# ---------------------------------------------------------------------------
# Public forward.
# ---------------------------------------------------------------------------
def classification_model_forward(x, prepared, *, force_layerwise=False):
    """Eval-mode forward. x: (B, n_features) f32 -> (B, n_labels) f32."""
    F, H1, H2, L = prepared["dims"]
    Fp, H1p, H2p, Lp = prepared["pdims"]
    B = x.shape[0]

    vmem_cap = _vmem_capacity_bytes()
    vmem_limit = int(vmem_cap - 8 * _MIB)      # ~56 MiB on v7x, ~120 MiB on v5e/v6e
    budget = (vmem_cap * 3) // 4               # tiling budget: ~48 MiB v7x, ~96 MiB v5e/v6e

    # Resident-weight footprint (single-buffered via pl.Buffered(1)).
    weight_bytes = 2 * (Fp * H1p + H1p * H2p + H2p * Lp) + 4 * 8 * (H1p + H2p + Lp)

    def step_bytes(tm):
        # double-buffered x tile (bf16) + out tile (f32) + intermediate activations
        return 2 * tm * Fp * 2 + 2 * tm * Lp * 4 + 2 * tm * (H1p + H2p) * 4

    fused_fits = weight_bytes + step_bytes(16) <= budget

    if force_layerwise or not fused_fits:
        TMf = min(256, _round_up(B, 16))
        Bp = _round_up(B, TMf)
        xp = jnp.zeros((Bp, Fp), jnp.bfloat16).at[:B, :F].set(x.astype(jnp.bfloat16))
        h = _tiled_linear(xp, prepared["w1p"], prepared["b1p"], relu=True,
                          out_dtype=jnp.bfloat16, vmem_limit=vmem_limit)
        h = _tiled_linear(h, prepared["w2p"], prepared["b2p"], relu=True,
                          out_dtype=jnp.bfloat16, vmem_limit=vmem_limit)
        out = _tiled_linear(h, prepared["w3p"], prepared["b3p"], relu=False,
                            out_dtype=jnp.float32, vmem_limit=vmem_limit)
        return out[:B, :L]

    # Fused path: pick TM (multiple of 16) under the generation-aware budget.
    TM = min(1024 if vmem_cap >= 96 * _MIB else 512, _round_up(B, 16))
    while TM > 16 and weight_bytes + step_bytes(TM) > budget:
        TM = max(16, _round_up(TM // 2, 16))
    Bp = _round_up(B, TM)
    # >= 2 grid steps so both TensorCores get work on 2-TC chips (harmless on 1-TC).
    while TM > 16 and Bp // TM < 2:
        TM = max(16, _round_up(TM // 2, 16))
        Bp = _round_up(B, TM)

    xp = jnp.zeros((Bp, Fp), jnp.bfloat16).at[:B, :F].set(x.astype(jnp.bfloat16))
    out = _fused_forward(xp, prepared, TM, Bp, vmem_limit)
    return out[:B, :L]


# ---------------------------------------------------------------------------
# Parameters / reference.
# ---------------------------------------------------------------------------
def init_params(key, n_features, n_hidden1, n_hidden2, n_labels):
    """Deterministic synthetic parameters (Linear weights stored as (in, out))."""
    ks = jax.random.split(key, 10)
    w1 = jax.random.normal(ks[0], (n_features, n_hidden1), jnp.float32) * 0.1
    b1 = jax.random.normal(ks[1], (n_hidden1,), jnp.float32) * 0.1
    g1 = 1.0 + 0.1 * jax.random.normal(ks[2], (n_hidden1,), jnp.float32)
    be1 = 0.1 * jax.random.normal(ks[3], (n_hidden1,), jnp.float32)
    rm1 = jnp.zeros((n_hidden1,), jnp.float32)
    rv1 = jnp.ones((n_hidden1,), jnp.float32)

    w2 = jax.random.normal(ks[4], (n_hidden1, n_hidden2), jnp.float32) * 0.1
    b2 = jax.random.normal(ks[5], (n_hidden2,), jnp.float32) * 0.1
    g2 = 1.0 + 0.1 * jax.random.normal(ks[6], (n_hidden2,), jnp.float32)
    be2 = 0.1 * jax.random.normal(ks[7], (n_hidden2,), jnp.float32)
    rm2 = jnp.zeros((n_hidden2,), jnp.float32)
    rv2 = jnp.ones((n_hidden2,), jnp.float32)

    w3 = jax.random.normal(ks[8], (n_hidden2, n_labels), jnp.float32) * 0.1
    b3 = jax.random.normal(ks[9], (n_labels,), jnp.float32) * 0.1

    return (w1, b1, g1, be1, rm1, rv1,
            w2, b2, g2, be2, rm2, rv2,
            w3, b3)


def _reference_forward(x, params):
    """Pure-JAX f32 reference (eval-mode forward)."""
    (w1, b1, g1, be1, rm1, rv1,
     w2, b2, g2, be2, rm2, rv2,
     w3, b3) = params
    eps = 1e-5
    h = x @ w1 + b1
    h = (h - rm1) / jnp.sqrt(rv1 + eps) * g1 + be1
    h = jnp.maximum(h, 0.0)
    h = h @ w2 + b2
    h = (h - rm2) / jnp.sqrt(rv2 + eps) * g2 + be2
    h = jnp.maximum(h, 0.0)
    return h @ w3 + b3


if __name__ == "__main__":
    # Small shapes consistent with the module's forward: x is (batch, n_features).
    batch = 8
    n_features, n_hidden1, n_hidden2, n_labels = 32, 64, 32, 16

    key = jax.random.PRNGKey(0)
    kx, kp = jax.random.split(key)
    x = jax.random.normal(kx, (batch, n_features), jnp.float32)
    params = init_params(kp, n_features, n_hidden1, n_hidden2, n_labels)

    # One-time prepare (BN fold + pad + bf16 cast) -- cacheable across calls.
    prepared = prepare_params(params)
    ref = _reference_forward(x, params)

    # Fused resident-weight path.
    out = jax.block_until_ready(classification_model_forward(x, prepared))
    assert out.shape == (batch, n_labels)
    assert jnp.allclose(out, ref, atol=2e-2, rtol=2e-2), \
        f"fused max abs err {jnp.max(jnp.abs(out - ref))}"

    # Also exercise the layer-wise K/N-tiled fallback (used for weights too large
    # to stay VMEM-resident on the current TPU generation).
    out_lw = jax.block_until_ready(
        classification_model_forward(x, prepared, force_layerwise=True))
    assert jnp.allclose(out_lw, ref, atol=2e-2, rtol=2e-2), \
        f"layerwise max abs err {jnp.max(jnp.abs(out_lw - ref))}"

    print("KERNEL_OK")
</pallas_src>

<mosaic_0001>
module attributes {stable_mosaic.version = 11 : i64} {
  func.func @_fused_kernel(%arg0: i32, %arg1: memref<16x128xbf16, #tpu.memory_space<vmem>>, %arg2: memref<128x128xbf16, #tpu.memory_space<vmem>>, %arg3: memref<128x128xbf16, #tpu.memory_space<vmem>>, %arg4: memref<128x128xbf16, #tpu.memory_space<vmem>>, %arg5: memref<8x128xf32, #tpu.memory_space<vmem>>, %arg6: memref<8x128xf32, #tpu.memory_space<vmem>>, %arg7: memref<8x128xf32, #tpu.memory_space<vmem>>, %arg8: memref<16x128xf32, #tpu.memory_space<vmem>>) attributes {dimension_semantics = [#tpu.dimension_semantics<parallel>], iteration_bounds = array<i64: 1>, scalar_prefetch = 0 : i64, scratch_operands = 0 : i64, tpu.core_type = #tpu.core_type<tc>, window_params = [{transform_indices = @transform_0, window_bounds = array<i64: 16, 128>}, {pipeline_mode = #tpu.pipeline_mode<synchronous>, transform_indices = @transform_1, window_bounds = array<i64: 128, 128>}, {pipeline_mode = #tpu.pipeline_mode<synchronous>, transform_indices = @transform_2, window_bounds = array<i64: 128, 128>}, {pipeline_mode = #tpu.pipeline_mode<synchronous>, transform_indices = @transform_3, window_bounds = array<i64: 128, 128>}, {pipeline_mode = #tpu.pipeline_mode<synchronous>, transform_indices = @transform_4, window_bounds = array<i64: 8, 128>}, {pipeline_mode = #tpu.pipeline_mode<synchronous>, transform_indices = @transform_5, window_bounds = array<i64: 8, 128>}, {pipeline_mode = #tpu.pipeline_mode<synchronous>, transform_indices = @transform_6, window_bounds = array<i64: 8, 128>}, {transform_indices = @transform_7, window_bounds = array<i64: 16, 128>}]} {
    %c0 = arith.constant 0 : index
    %c0_0 = arith.constant 0 : index
    %0 = vector.load %arg1[%c0, %c0_0] : memref<16x128xbf16, #tpu.memory_space<vmem>>, vector<16x128xbf16>
    %c0_1 = arith.constant 0 : index
    %c0_2 = arith.constant 0 : index
    %1 = vector.load %arg2[%c0_1, %c0_2] : memref<128x128xbf16, #tpu.memory_space<vmem>>, vector<128x128xbf16>
    %cst = arith.constant dense<0.000000e+00> : vector<16x128xf32>
    %2 = tpu.matmul %0, %1, %cst {dimension_numbers = #tpu.dot_dimension_numbers<[1], [0], [0], [1], [0, 0, 1, 1], [], []>} : vector<16x128xbf16>, vector<128x128xbf16>, vector<16x128xf32> -> vector<16x128xf32>
    %c0_3 = arith.constant 0 : index
    %c0_4 = arith.constant 0 : index
    %3 = vector.load %arg5[%c0_3, %c0_4] : memref<8x128xf32, #tpu.memory_space<vmem>>, vector<1x128xf32>
    %4 = vector.broadcast %3 : vector<1x128xf32> to vector<16x128xf32>
    %5 = arith.addf %2, %4 : vector<16x128xf32>
    %cst_5 = arith.constant 0.000000e+00 : f32
    %6 = vector.broadcast %cst_5 : f32 to vector<16x128xf32>
    %7 = arith.maximumf %5, %6 : vector<16x128xf32>
    %8 = arith.truncf %7 : vector<16x128xf32> to vector<16x128xbf16>
    %c0_6 = arith.constant 0 : index
    %c0_7 = arith.constant 0 : index
    %9 = vector.load %arg3[%c0_6, %c0_7] : memref<128x128xbf16, #tpu.memory_space<vmem>>, vector<128x128xbf16>
    %cst_8 = arith.constant dense<0.000000e+00> : vector<16x128xf32>
    %10 = tpu.matmul %8, %9, %cst_8 {dimension_numbers = #tpu.dot_dimension_numbers<[1], [0], [0], [1], [0, 0, 1, 1], [], []>} : vector<16x128xbf16>, vector<128x128xbf16>, vector<16x128xf32> -> vector<16x128xf32>
    %c0_9 = arith.constant 0 : index
    %c0_10 = arith.constant 0 : index
    %11 = vector.load %arg6[%c0_9, %c0_10] : memref<8x128xf32, #tpu.memory_space<vmem>>, vector<1x128xf32>
    %12 = vector.broadcast %11 : vector<1x128xf32> to vector<16x128xf32>
    %13 = arith.addf %10, %12 : vector<16x128xf32>
    %cst_11 = arith.constant 0.000000e+00 : f32
    %14 = vector.broadcast %cst_11 : f32 to vector<16x128xf32>
    %15 = arith.maximumf %13, %14 : vector<16x128xf32>
    %16 = arith.truncf %15 : vector<16x128xf32> to vector<16x128xbf16>
    %c0_12 = arith.constant 0 : index
    %c0_13 = arith.constant 0 : index
    %17 = vector.load %arg4[%c0_12, %c0_13] : memref<128x128xbf16, #tpu.memory_space<vmem>>, vector<128x128xbf16>
    %cst_14 = arith.constant dense<0.000000e+00> : vector<16x128xf32>
    %18 = tpu.matmul %16, %17, %cst_14 {dimension_numbers = #tpu.dot_dimension_numbers<[1], [0], [0], [1], [0, 0, 1, 1], [], []>} : vector<16x128xbf16>, vector<128x128xbf16>, vector<16x128xf32> -> vector<16x128xf32>
    %c0_15 = arith.constant 0 : index
    %c0_16 = arith.constant 0 : index
    %19 = vector.load %arg7[%c0_15, %c0_16] : memref<8x128xf32, #tpu.memory_space<vmem>>, vector<1x128xf32>
    %20 = vector.broadcast %19 : vector<1x128xf32> to vector<16x128xf32>
    %21 = arith.addf %18, %20 : vector<16x128xf32>
    %c0_17 = arith.constant 0 : index
    %c0_18 = arith.constant 0 : index
    %22 = vector.load %arg8[%c0_17, %c0_18] : memref<16x128xf32, #tpu.memory_space<vmem>>, vector<16x128xf32>
    tpu.vector_store %arg8[%c0_17, %c0_18], %21 {strides = array<i32>} : memref<16x128xf32, #tpu.memory_space<vmem>>, vector<16x128xf32>,
    return
  }
  func.func @transform_0(%arg0: i32) -> (i32, i32) {
    %c0_i32 = arith.constant 0 : i32
    %c0_i32_0 = arith.constant 0 : i32
    return %arg0, %c0_i32 : i32, i32
  }
  func.func @transform_1(%arg0: i32) -> (i32, i32) {
    %c0_i32 = arith.constant 0 : i32
    %c0_i32_0 = arith.constant 0 : i32
    %c0_i32_1 = arith.constant 0 : i32
    return %c0_i32, %c0_i32_0 : i32, i32
  }
  func.func @transform_2(%arg0: i32) -> (i32, i32) {
    %c0_i32 = arith.constant 0 : i32
    %c0_i32_0 = arith.constant 0 : i32
    %c0_i32_1 = arith.constant 0 : i32
    return %c0_i32, %c0_i32_0 : i32, i32
  }
  func.func @transform_3(%arg0: i32) -> (i32, i32) {
    %c0_i32 = arith.constant 0 : i32
    %c0_i32_0 = arith.constant 0 : i32
    %c0_i32_1 = arith.constant 0 : i32
    return %c0_i32, %c0_i32_0 : i32, i32
  }
  func.func @transform_4(%arg0: i32) -> (i32, i32) {
    %c0_i32 = arith.constant 0 : i32
    %c0_i32_0 = arith.constant 0 : i32
    %c0_i32_1 = arith.constant 0 : i32
    return %c0_i32, %c0_i32_0 : i32, i32
  }
  func.func @transform_5(%arg0: i32) -> (i32, i32) {
    %c0_i32 = arith.constant 0 : i32
    %c0_i32_0 = arith.constant 0 : i32
    %c0_i32_1 = arith.constant 0 : i32
    return %c0_i32, %c0_i32_0 : i32, i32
  }
  func.func @transform_6(%arg0: i32) -> (i32, i32) {
    %c0_i32 = arith.constant 0 : i32
    %c0_i32_0 = arith.constant 0 : i32
    %c0_i32_1 = arith.constant 0 : i32
    return %c0_i32, %c0_i32_0 : i32, i32
  }
  func.func @transform_7(%arg0: i32) -> (i32, i32) {
    %c0_i32 = arith.constant 0 : i32
    %c0_i32_0 = arith.constant 0 : i32
    return %arg0, %c0_i32 : i32, i32
  }
}

module attributes {stable_mosaic.version = 11 : i64} {
  func.func @_fused_kernel(%arg0: i32, %arg1: memref<16x128xbf16, #tpu.memory_space<vmem>>, %arg2: memref<128x128xbf16, #tpu.memory_space<vmem>>, %arg3: memref<128x128xbf16, #tpu.memory_space<vmem>>, %arg4: memref<128x128xbf16, #tpu.memory_space<vmem>>, %arg5: memref<8x128xf32, #tpu.memory_space<vmem>>, %arg6: memref<8x128xf32, #tpu.memory_space<vmem>>, %arg7: memref<8x128xf32, #tpu.memory_space<vmem>>, %arg8: memref<16x128xf32, #tpu.memory_space<vmem>>) attributes {dimension_semantics = [#tpu.dimension_semantics<parallel>], iteration_bounds = array<i64: 1>, scalar_prefetch = 0 : i64, scratch_operands = 0 : i64, tpu.core_type = #tpu.core_type<tc>, window_params = [{transform_indices = @transform_0, window_bounds = array<i64: 16, 128>}, {pipeline_mode = #tpu.pipeline_mode<synchronous>, transform_indices = @transform_1, window_bounds = array<i64: 128, 128>}, {pipeline_mode = #tpu.pipeline_mode<synchronous>, transform_indices = @transform_2, window_bounds = array<i64: 128, 128>}, {pipeline_mode = #tpu.pipeline_mode<synchronous>, transform_indices = @transform_3, window_bounds = array<i64: 128, 128>}, {pipeline_mode = #tpu.pipeline_mode<synchronous>, transform_indices = @transform_4, window_bounds = array<i64: 8, 128>}, {pipeline_mode = #tpu.pipeline_mode<synchronous>, transform_indices = @transform_5, window_bounds = array<i64: 8, 128>}, {pipeline_mode = #tpu.pipeline_mode<synchronous>, transform_indices = @transform_6, window_bounds = array<i64: 8, 128>}, {transform_indices = @transform_7, window_bounds = array<i64: 16, 128>}]} {
    %c0 = arith.constant 0 : index
    %c0_0 = arith.constant 0 : index
    %0 = vector.load %arg1[%c0, %c0_0] : memref<16x128xbf16, #tpu.memory_space<vmem>>, vector<16x128xbf16>
    %c0_1 = arith.constant 0 : index
    %c0_2 = arith.constant 0 : index
    %1 = vector.load %arg2[%c0_1, %c0_2] : memref<128x128xbf16, #tpu.memory_space<vmem>>, vector<128x128xbf16>
    %cst = arith.constant dense<0.000000e+00> : vector<16x128xf32>
    %2 = tpu.matmul %0, %1, %cst {dimension_numbers = #tpu.dot_dimension_numbers<[1], [0], [0], [1], [0, 0, 1, 1], [], []>} : vector<16x128xbf16>, vector<128x128xbf16>, vector<16x128xf32> -> vector<16x128xf32>
    %c0_3 = arith.constant 0 : index
    %c0_4 = arith.constant 0 : index
    %3 = vector.load %arg5[%c0_3, %c0_4] : memref<8x128xf32, #tpu.memory_space<vmem>>, vector<1x128xf32>
    %4 = vector.broadcast %3 : vector<1x128xf32> to vector<16x128xf32>
    %5 = arith.addf %2, %4 : vector<16x128xf32>
    %cst_5 = arith.constant 0.000000e+00 : f32
    %6 = vector.broadcast %cst_5 : f32 to vector<16x128xf32>
    %7 = arith.maximumf %5, %6 : vector<16x128xf32>
    %8 = arith.truncf %7 : vector<16x128xf32> to vector<16x128xbf16>
    %c0_6 = arith.constant 0 : index
    %c0_7 = arith.constant 0 : index
    %9 = vector.load %arg3[%c0_6, %c0_7] : memref<128x128xbf16, #tpu.memory_space<vmem>>, vector<128x128xbf16>
    %cst_8 = arith.constant dense<0.000000e+00> : vector<16x128xf32>
    %10 = tpu.matmul %8, %9, %cst_8 {dimension_numbers = #tpu.dot_dimension_numbers<[1], [0], [0], [1], [0, 0, 1, 1], [], []>} : vector<16x128xbf16>, vector<128x128xbf16>, vector<16x128xf32> -> vector<16x128xf32>
    %c0_9 = arith.constant 0 : index
    %c0_10 = arith.constant 0 : index
    %11 = vector.load %arg6[%c0_9, %c0_10] : memref<8x128xf32, #tpu.memory_space<vmem>>, vector<1x128xf32>
    %12 = vector.broadcast %11 : vector<1x128xf32> to vector<16x128xf32>
    %13 = arith.addf %10, %12 : vector<16x128xf32>
    %cst_11 = arith.constant 0.000000e+00 : f32
    %14 = vector.broadcast %cst_11 : f32 to vector<16x128xf32>
    %15 = arith.maximumf %13, %14 : vector<16x128xf32>
    %16 = arith.truncf %15 : vector<16x128xf32> to vector<16x128xbf16>
    %c0_12 = arith.constant 0 : index
    %c0_13 = arith.constant 0 : index
    %17 = vector.load %arg4[%c0_12, %c0_13] : memref<128x128xbf16, #tpu.memory_space<vmem>>, vector<128x128xbf16>
    %cst_14 = arith.constant dense<0.000000e+00> : vector<16x128xf32>
    %18 = tpu.matmul %16, %17, %cst_14 {dimension_numbers = #tpu.dot_dimension_numbers<[1], [0], [0], [1], [0, 0, 1, 1], [], []>} : vector<16x128xbf16>, vector<128x128xbf16>, vector<16x128xf32> -> vector<16x128xf32>
    %c0_15 = arith.constant 0 : index
    %c0_16 = arith.constant 0 : index
    %19 = vector.load %arg7[%c0_15, %c0_16] : memref<8x128xf32, #tpu.memory_space<vmem>>, vector<1x128xf32>
    %20 = vector.broadcast %19 : vector<1x128xf32> to vector<16x128xf32>
    %21 = arith.addf %18, %20 : vector<16x128xf32>
    %c0_17 = arith.constant 0 : index
    %c0_18 = arith.constant 0 : index
    %22 = vector.load %arg8[%c0_17, %c0_18] : memref<16x128xf32, #tpu.memory_space<vmem>>, vector<16x128xf32>
    tpu.vector_store %arg8[%c0_17, %c0_18], %21 {strides = array<i32>} : memref<16x128xf32, #tpu.memory_space<vmem>>, vector<16x128xf32>,
    return
  }
  func.func @transform_0(%arg0: i32) -> (i32, i32) {
    %c0_i32 = arith.constant 0 : i32
    %c0_i32_0 = arith.constant 0 : i32
    return %arg0, %c0_i32 : i32, i32
  }
  func.func @transform_1(%arg0: i32) -> (i32, i32) {
    %c0_i32 = arith.constant 0 : i32
    %c0_i32_0 = arith.constant 0 : i32
    %c0_i32_1 = arith.constant 0 : i32
    return %c0_i32, %c0_i32_0 : i32, i32
  }
  func.func @transform_2(%arg0: i32) -> (i32, i32) {
    %c0_i32 = arith.constant 0 : i32
    %c0_i32_0 = arith.constant 0 : i32
    %c0_i32_1 = arith.constant 0 : i32
    return %c0_i32, %c0_i32_0 : i32, i32
  }
  func.func @transform_3(%arg0: i32) -> (i32, i32) {
    %c0_i32 = arith.constant 0 : i32
    %c0_i32_0 = arith.constant 0 : i32
    %c0_i32_1 = arith.constant 0 : i32
    return %c0_i32, %c0_i32_0 : i32, i32
  }
  func.func @transform_4(%arg0: i32) -> (i32, i32) {
    %c0_i32 = arith.constant 0 : i32
    %c0_i32_0 = arith.constant 0 : i32
    %c0_i32_1 = arith.constant 0 : i32
    return %c0_i32, %c0_i32_0 : i32, i32
  }
  func.func @transform_5(%arg0: i32) -> (i32, i32) {
    %c0_i32 = arith.constant 0 : i32
    %c0_i32_0 = arith.constant 0 : i32
    %c0_i32_1 = arith.constant 0 : i32
    return %c0_i32, %c0_i32_0 : i32, i32
  }
  func.func @transform_6(%arg0: i32) -> (i32, i32) {
    %c0_i32 = arith.constant 0 : i32
    %c0_i32_0 = arith.constant 0 : i32
    %c0_i32_1 = arith.constant 0 : i32
    return %c0_i32, %c0_i32_0 : i32, i32
  }
  func.func @transform_7(%arg0: i32) -> (i32, i32) {
    %c0_i32 = arith.constant 0 : i32
    %c0_i32_0 = arith.constant 0 : i32
    return %arg0, %c0_i32 : i32, i32
  }
}

</mosaic_0001>

<llo_original>
// kernel: tpu_custom_call.1
$region0: #{tpu_custom_call.1}
  #allocation0 [shape = 'u32[]', space=smem, size = 0x4, offset = 0x4, fixed_abs, tag = 'smem constant byte address 0x4 - core index']
  #allocation1 [shape = 'u32[144,128]{1,0:T(1,128)}', space=vmem, size = 0x12000, scoped, tag = 'internal scratch']
  %s0 = inlined_call_operand.hbm [shape: bf16[16,128], index: 0, kind: input, shape index: {}]
  %s1 = inlined_call_operand.hbm [shape: bf16[128,128], index: 1, kind: input, shape index: {}]
  %s2 = inlined_call_operand.hbm [shape: bf16[128,128], index: 2, kind: input, shape index: {}]
  %s3 = inlined_call_operand.hbm [shape: bf16[128,128], index: 3, kind: input, shape index: {}]
  %s4 = inlined_call_operand.vmem [shape: f32[8,128], index: 4, kind: input, shape index: {}]
  %s5 = inlined_call_operand.vmem [shape: f32[8,128], index: 5, kind: input, shape index: {}]
  %s6 = inlined_call_operand.hbm [shape: f32[8,128], index: 6, kind: input, shape index: {}]
  %s7 = inlined_call_operand.hbm [shape: f32[16,128], index: 7, kind: output, shape index: {}]
  %s8 = sld [smem:[#allocation0]]
  $region58: #{tpu_custom_call.1} parent=0
    _
  %s10 = ssub.s32 1, %s8
  %s11 = scalar_select 0, %s10, %s8
  $region1: #{tpu_custom_call.1} parent=0
    #allocation2 [shape = 'u8[4096]{0}', space=vmem, size = 0x1000, scoped, tag = 'input window, operand 0, single buffered']
    #allocation3 [shape = 's32[1]{0}', space=sflag, size = 0x4, scoped, tag = 'scoped memory for tpu_custom_call.1']
    #allocation4 [shape = 's32[1]{0}', space=sflag, size = 0x4, scoped, tag = 'scoped memory for tpu_custom_call.1']
    #allocation5 [shape = 'u8[32768]{0}', space=vmem, size = 0x8000, scoped, tag = 'input window, operand 1, single buffered']
    #allocation6 [shape = 's32[1]{0}', space=sflag, size = 0x4, scoped, tag = 'scoped memory for tpu_custom_call.1']
    #allocation7 [shape = 'u8[32768]{0}', space=vmem, size = 0x8000, scoped, tag = 'input window, operand 2, single buffered']
    #allocation8 [shape = 'u8[32768]{0}', space=vmem, size = 0x8000, scoped, tag = 'input window, operand 3, single buffered']
    #allocation9 [shape = 's32[1]{0}', space=sflag, size = 0x4, scoped, tag = 'scoped memory for tpu_custom_call.1']
    #allocation10 [shape = 'u8[4096]{0}', space=vmem, size = 0x1000, scoped, tag = 'input window, operand 6, single buffered']
    #allocation11 [shape = 'u8[8192]{0}', space=vmem, size = 0x2000, scoped, tag = 'output window, operand 0, single buffered']
    %12 = vsyncpa [#allocation3], 0
    %13 = vsyncpa [#allocation6], 0
    %14 = vsyncpa [#allocation9], 0
    %15 = vsyncpa [#allocation4], 0
    // Predicated region
    $region2: #{tpu_custom_call.1} parent=1 // pred_check
      _
    $region3: #{tpu_custom_call.1} parent=1 // pred_check_branch
      %17 = sbr.rel (0) target = $region5
    $region4: #{tpu_custom_call.1} parent=1 // pred_region
      %s19 = ssub.s32 128, 128
      %20 = vsyncadd [#allocation3], %s19
      %s21 = sshll.u32 [#allocation2], 4
      %s22 = int_to_ptr.vmem [resolvable:$true] %s21
      %27 = dma.hbm_to_vmem [thread:$0]  %s0, 128, %s22, [#allocation3], 64, 64, 4
    $region5: #{tpu_custom_call.1} parent=1 // pred_fallthru
      _
    // Predicated region
    $region6: #{tpu_custom_call.1} parent=1 // pred_check
      _
    $region7: #{tpu_custom_call.1} parent=1 // pred_check_branch
      %29 = sbr.rel (0) target = $region9
    $region8: #{tpu_custom_call.1} parent=1 // pred_region
      %s31 = ssub.s32 1024, 1024
      %32 = vsyncadd [#allocation6], %s31
      %s33 = sshll.u32 [#allocation5], 4
      %s34 = int_to_ptr.vmem [resolvable:$true] %s33
      %39 = dma.hbm_to_vmem [thread:$0]  %s1, 1024, %s34, [#allocation6], 64, 64, 4
    $region9: #{tpu_custom_call.1} parent=1 // pred_fallthru
      _
    // Predicated region
    $region10: #{tpu_custom_call.1} parent=1 // pred_check
      _
    $region11: #{tpu_custom_call.1} parent=1 // pred_check_branch
      %41 = sbr.rel (0) target = $region13
    $region12: #{tpu_custom_call.1} parent=1 // pred_region
      %s43 = ssub.s32 1024, 1024
      %44 = vsyncadd [#allocation6], %s43
      %s45 = sshll.u32 [#allocation7], 4
      %s46 = int_to_ptr.vmem [resolvable:$true] %s45
      %51 = dma.hbm_to_vmem [thread:$0]  %s2, 1024, %s46, [#allocation6], 64, 64, 4
    $region13: #{tpu_custom_call.1} parent=1 // pred_fallthru
      _
    // Predicated region
    $region14: #{tpu_custom_call.1} parent=1 // pred_check
      _
    $region15: #{tpu_custom_call.1} parent=1 // pred_check_branch
      %53 = sbr.rel (0) target = $region17
    $region16: #{tpu_custom_call.1} parent=1 // pred_region
      %s55 = ssub.s32 1024, 1024
      %56 = vsyncadd [#allocation9], %s55
      %s57 = sshll.u32 [#allocation8], 4
      %s58 = int_to_ptr.vmem [resolvable:$true] %s57
      %63 = dma.hbm_to_vmem [thread:$0]  %s3, 1024, %s58, [#allocation9], 64, 64, 4
    $region17: #{tpu_custom_call.1} parent=1 // pred_fallthru
      _
    // Predicated region
    $region18: #{tpu_custom_call.1} parent=1 // pred_check
      _
    $region19: #{tpu_custom_call.1} parent=1 // pred_check_branch
      %65 = sbr.rel (0) target = $region21
    $region20: #{tpu_custom_call.1} parent=1 // pred_region
      _
    $region21: #{tpu_custom_call.1} parent=1 // pred_fallthru
      _
    // Predicated region
    $region22: #{tpu_custom_call.1} parent=1 // pred_check
      _
    $region23: #{tpu_custom_call.1} parent=1 // pred_check_branch
      %67 = sbr.rel (0) target = $region25
    $region24: #{tpu_custom_call.1} parent=1 // pred_region
      _
    $region25: #{tpu_custom_call.1} parent=1 // pred_fallthru
      _
    // Predicated region
    $region26: #{tpu_custom_call.1} parent=1 // pred_check
      _
    $region27: #{tpu_custom_call.1} parent=1 // pred_check_branch
      %69 = sbr.rel (0) target = $region29
    $region28: #{tpu_custom_call.1} parent=1 // pred_region
      %s71 = ssub.s32 128, 128
      %72 = vsyncadd [#allocation9], %s71
      %s74 = sshll.u32 [#allocation10], 4
      %s75 = int_to_ptr.vmem [resolvable:$true] %s74
      %77 = dma.hbm_to_vmem [thread:$0]  %s6, 128, %s75, [#allocation9]
    $region29: #{tpu_custom_call.1} parent=1 // pred_fallthru
      _
    // Predicated region
    $region30: #{tpu_custom_call.1} parent=1 // pred_check
      _
    $region31: #{tpu_custom_call.1} parent=1 // pred_check_branch
      %79 = sbr.rel (0) target = $region33
    $region32: #{tpu_custom_call.1} parent=1 // pred_region
      %80 = dma.done [#allocation3], 128
    $region33: #{tpu_custom_call.1} parent=1 // pred_fallthru
      _
    // Predicated region
    $region34: #{tpu_custom_call.1} parent=1 // pred_check
      _
    $region35: #{tpu_custom_call.1} parent=1 // pred_check_branch
      %82 = sbr.rel (0) target = $region37
    $region36: #{tpu_custom_call.1} parent=1 // pred_region
      %83 = dma.done [#allocation6], 1024
    $region37: #{tpu_custom_call.1} parent=1 // pred_fallthru
      _
    // Predicated region
    $region38: #{tpu_custom_call.1} parent=1 // pred_check
      _
    $region39: #{tpu_custom_call.1} parent=1 // pred_check_branch
      %85 = sbr.rel (0) target = $region41
    $region40: #{tpu_custom_call.1} parent=1 // pred_region
      %86 = dma.done [#allocation6], 1024
    $region41: #{tpu_custom_call.1} parent=1 // pred_fallthru
      _
    // Predicated region
    $region42: #{tpu_custom_call.1} parent=1 // pred_check
      _
    $region43: #{tpu_custom_call.1} parent=1 // pred_check_branch
      %88 = sbr.rel (0) target = $region45
    $region44: #{tpu_custom_call.1} parent=1 // pred_region
      %89 = dma.done [#allocation9], 1024
    $region45: #{tpu_custom_call.1} parent=1 // pred_fallthru
      _
    // Predicated region
    $region46: #{tpu_custom_call.1} parent=1 // pred_check
      _
    $region47: #{tpu_custom_call.1} parent=1 // pred_check_branch
      %91 = sbr.rel (0) target = $region49
    $region48: #{tpu_custom_call.1} parent=1 // pred_region
      %92 = dma.done [#allocation9], 128
    $region49: #{tpu_custom_call.1} parent=1 // pred_fallthru
      _
    %v94 = vld [vmem:[#allocation2] sm:$0xf]
    %v95 = vld [vmem:[#allocation2 + $0x4] sm:$0xf]
    %v96 = vld [vmem:[#allocation5] sm:$0xf]
    %v97 = vld [vmem:[#allocation5 + $0x4] sm:$0xf]
    %v98 = vld [vmem:[#allocation5 + $0x8] sm:$0xf]
    %v99 = vld [vmem:[#allocation5 + $0xc] sm:$0xf]
    %v100 = vld [vmem:[#allocation5 + $0x10] sm:$0xf]
    %v101 = vld [vmem:[#allocation5 + $0x14] sm:$0xf]
    %v102 = vld [vmem:[#allocation5 + $0x18] sm:$0xf]
    %v103 = vld [vmem:[#allocation5 + $0x1c] sm:$0xf]
    %v104 = vld [vmem:[#allocation5 + $0x20] sm:$0xf]
    %v105 = vld [vmem:[#allocation5 + $0x24] sm:$0xf]
    %v106 = vld [vmem:[#allocation5 + $0x28] sm:$0xf]
    %v107 = vld [vmem:[#allocation5 + $0x2c] sm:$0xf]
    %v108 = vld [vmem:[#allocation5 + $0x30] sm:$0xf]
    %v109 = vld [vmem:[#allocation5 + $0x34] sm:$0xf]
    %v110 = vld [vmem:[#allocation5 + $0x38] sm:$0xf]
    %v111 = vld [vmem:[#allocation5 + $0x3c] sm:$0xf]
    %v112 = vld [vmem:[%s4] sm:$0x1]
    %v113 = vlaneseq
    %v114 = vshrl.u32 %v113, 7
    %v115 = vsub.s32 0, %v114
    %v116 = vrot.slane %v112, %v115
    %v119 = vunpack.c.l.b16 %v94
    %v120 = vunpack.c.l.b16 %v95
    %v121 = vpack.c.b16 %v120, %v119
    %v139 = vunpack.c.l.b16 %v96
    %v140 = vunpack.c.l.b16 %v97
    %v141 = vunpack.c.l.b16 %v98
    %v142 = vunpack.c.l.b16 %v99
    %v143 = vunpack.c.l.b16 %v100
    %v144 = vunpack.c.l.b16 %v101
    %v145 = vunpack.c.l.b16 %v102
    %v146 = vunpack.c.l.b16 %v103
    %v147 = vunpack.c.l.b16 %v104
    %v148 = vunpack.c.l.b16 %v105
    %v149 = vunpack.c.l.b16 %v106
    %v150 = vunpack.c.l.b16 %v107
    %v151 = vunpack.c.l.b16 %v108
    %v152 = vunpack.c.l.b16 %v109
    %v153 = vunpack.c.l.b16 %v110
    %v154 = vunpack.c.l.b16 %v111
    %v155 = vpack.c.b16 %v140, %v139
    %v156 = vpack.c.b16 %v142, %v141
    %v157 = vpack.c.b16 %v144, %v143
    %v158 = vpack.c.b16 %v146, %v145
    %v159 = vpack.c.b16 %v148, %v147
    %v160 = vpack.c.b16 %v150, %v149
    %v161 = vpack.c.b16 %v152, %v151
    %v162 = vpack.c.b16 %v154, %v153
    %171 = vmatprep.subr.bf16.mxu0 0
    %172 = vmatpush1.bf16.msra.mxu0 %v155
    %173 = vmatprep.subr.bf16.mxu0 0
    %174 = vmatpush1.bf16.msra.mxu0 %v156
    %175 = vmatprep.subr.bf16.mxu0 0
    %176 = vmatpush1.bf16.msra.mxu0 %v157
    %177 = vmatprep.subr.bf16.mxu0 0
    %178 = vmatpush1.bf16.msra.mxu0 %v158
    %179 = vmatprep.subr.bf16.mxu0 0
    %180 = vmatpush1.bf16.msra.mxu0 %v159
    %181 = vmatprep.subr.bf16.mxu0 0
    %182 = vmatpush1.bf16.msra.mxu0 %v160
    %183 = vmatprep.subr.bf16.mxu0 0
    %184 = vmatpush1.bf16.msra.mxu0 %v161
    %185 = vmatprep.subr.bf16.mxu0 0
    %186 = vmatpush1.bf16.msra.mxu0 %v162
    %187 = vmatprep.subr.bf16.mxu0 0
    %188 = vmatpush1.bf16.msra.mxu0 0
    %189 = vmatprep.subr.bf16.mxu0 0
    %190 = vmatpush1.bf16.msra.mxu0 0
    %191 = vmatprep.subr.bf16.mxu0 0
    %192 = vmatpush1.bf16.msra.mxu0 0
    %193 = vmatprep.subr.bf16.mxu0 0
    %194 = vmatpush1.bf16.msra.mxu0 0
    %195 = vmatprep.subr.bf16.mxu0 0
    %196 = vmatpush1.bf16.msra.mxu0 0
    %197 = vmatprep.subr.bf16.mxu0 0
    %198 = vmatpush1.bf16.msra.mxu0 0
    %199 = vmatprep.subr.bf16.mxu0 0
    %200 = vmatpush1.bf16.msra.mxu0 0
    %201 = vmatprep.subr.bf16.mxu0 0
    %202 = vmatpush1.bf16.msra.mxu0 0
    %203 = vmatprep.mubr.bf16.mxu0 0
    %204 = vmatmul.mubr.bf16.gmra.mrb[0].mxu0 %v121
    %v205 = vpop.f32.mrb[0].mxu0
    %v206 = vadd.f32 %v116, %v205
    %v207 = vpop.f32.mrb[0].mxu0
    %v208 = vpop.f32.mrb[0].mxu0
    %v209 = vadd.f32 %v116, %v208
    %v210 = vpop.f32.mrb[0].mxu0
    %211 = vdwg.mxu0
    %v212 = vmax.f32 %v206, 0.0
    %v213 = vmax.f32 %v209, 0.0
    %v214 = vpack.c.bf16 %v213, %v212
    %v215 = vld [vmem:[#allocation7] sm:$0xf]
    %v216 = vld [vmem:[#allocation7 + $0x4] sm:$0xf]
    %v217 = vld [vmem:[#allocation7 + $0x8] sm:$0xf]
    %v218 = vld [vmem:[#allocation7 + $0xc] sm:$0xf]
    %v219 = vld [vmem:[#allocation7 + $0x10] sm:$0xf]
    %v220 = vld [vmem:[#allocation7 + $0x14] sm:$0xf]
    %v221 = vld [vmem:[#allocation7 + $0x18] sm:$0xf]
    %v222 = vld [vmem:[#allocation7 + $0x1c] sm:$0xf]
    %v223 = vld [vmem:[#allocation7 + $0x20] sm:$0xf]
    %v224 = vld [vmem:[#allocation7 + $0x24] sm:$0xf]
    %v225 = vld [vmem:[#allocation7 + $0x28] sm:$0xf]
    %v226 = vld [vmem:[#allocation7 + $0x2c] sm:$0xf]
    %v227 = vld [vmem:[#allocation7 + $0x30] sm:$0xf]
    %v228 = vld [vmem:[#allocation7 + $0x34] sm:$0xf]
    %v229 = vld [vmem:[#allocation7 + $0x38] sm:$0xf]
    %v230 = vld [vmem:[#allocation7 + $0x3c] sm:$0xf]
    %v231 = vld [vmem:[%s5] sm:$0x1]
    %v232 = vlaneseq
    %v233 = vshrl.u32 %v232, 7
    %v234 = vsub.s32 0, %v233
    %v235 = vrot.slane %v231, %v234
    %v252 = vunpack.c.l.b16 %v215
    %v253 = vunpack.c.l.b16 %v216
    %v254 = vunpack.c.l.b16 %v217
    %v255 = vunpack.c.l.b16 %v218
    %v256 = vunpack.c.l.b16 %v219
    %v257 = vunpack.c.l.b16 %v220
    %v258 = vunpack.c.l.b16 %v221
    %v259 = vunpack.c.l.b16 %v222
    %v260 = vunpack.c.l.b16 %v223
    %v261 = vunpack.c.l.b16 %v224
    %v262 = vunpack.c.l.b16 %v225
    %v263 = vunpack.c.l.b16 %v226
    %v264 = vunpack.c.l.b16 %v227
    %v265 = vunpack.c.l.b16 %v228
    %v266 = vunpack.c.l.b16 %v229
    %v267 = vunpack.c.l.b16 %v230
    %v268 = vpack.c.b16 %v253, %v252
    %v269 = vpack.c.b16 %v255, %v254
    %v270 = vpack.c.b16 %v257, %v256
    %v271 = vpack.c.b16 %v259, %v258
    %v272 = vpack.c.b16 %v261, %v260
    %v273 = vpack.c.b16 %v263, %v262
    %v274 = vpack.c.b16 %v265, %v264
    %v275 = vpack.c.b16 %v267, %v266
    %284 = vmatprep.subr.bf16.mxu0 0
    %285 = vmatpush1.bf16.msra.mxu0 %v268
    %286 = vmatprep.subr.bf16.mxu0 0
    %287 = vmatpush1.bf16.msra.mxu0 %v269
    %288 = vmatprep.subr.bf16.mxu0 0
    %289 = vmatpush1.bf16.msra.mxu0 %v270
    %290 = vmatprep.subr.bf16.mxu0 0
    %291 = vmatpush1.bf16.msra.mxu0 %v271
    %292 = vmatprep.subr.bf16.mxu0 0
    %293 = vmatpush1.bf16.msra.mxu0 %v272
    %294 = vmatprep.subr.bf16.mxu0 0
    %295 = vmatpush1.bf16.msra.mxu0 %v273
    %296 = vmatprep.subr.bf16.mxu0 0
    %297 = vmatpush1.bf16.msra.mxu0 %v274
    %298 = vmatprep.subr.bf16.mxu0 0
    %299 = vmatpush1.bf16.msra.mxu0 %v275
    %300 = vmatprep.subr.bf16.mxu0 0
    %301 = vmatpush1.bf16.msra.mxu0 0
    %302 = vmatprep.subr.bf16.mxu0 0
    %303 = vmatpush1.bf16.msra.mxu0 0
    %304 = vmatprep.subr.bf16.mxu0 0
    %305 = vmatpush1.bf16.msra.mxu0 0
    %306 = vmatprep.subr.bf16.mxu0 0
    %307 = vmatpush1.bf16.msra.mxu0 0
    %308 = vmatprep.subr.bf16.mxu0 0
    %309 = vmatpush1.bf16.msra.mxu0 0
    %310 = vmatprep.subr.bf16.mxu0 0
    %311 = vmatpush1.bf16.msra.mxu0 0
    %312 = vmatprep.subr.bf16.mxu0 0
    %313 = vmatpush1.bf16.msra.mxu0 0
    %314 = vmatprep.subr.bf16.mxu0 0
    %315 = vmatpush1.bf16.msra.mxu0 0
    %316 = vmatprep.mubr.bf16.mxu0 0
    %317 = vmatmul.mubr.bf16.gmra.mrb[0].mxu0 %v214
    %v318 = vpop.f32.mrb[0].mxu0
    %v319 = vadd.f32 %v235, %v318
    %v320 = vpop.f32.mrb[0].mxu0
    %v321 = vpop.f32.mrb[0].mxu0
    %v322 = vadd.f32 %v235, %v321
    %v323 = vpop.f32.mrb[0].mxu0
    %324 = vdwg.mxu0
    %v325 = vmax.f32 %v319, 0.0
    %v326 = vmax.f32 %v322, 0.0
    %v327 = vpack.c.bf16 %v326, %v325
    %v328 = vld [vmem:[#allocation8] sm:$0xf]
    %v329 = vld [vmem:[#allocation8 + $0x4] sm:$0xf]
    %v330 = vld [vmem:[#allocation8 + $0x8] sm:$0xf]
    %v331 = vld [vmem:[#allocation8 + $0xc] sm:$0xf]
    %v332 = vld [vmem:[#allocation8 + $0x10] sm:$0xf]
    %v333 = vld [vmem:[#allocation8 + $0x14] sm:$0xf]
    %v334 = vld [vmem:[#allocation8 + $0x18] sm:$0xf]
    %v335 = vld [vmem:[#allocation8 + $0x1c] sm:$0xf]
    %v336 = vld [vmem:[#allocation8 + $0x20] sm:$0xf]
    %v337 = vld [vmem:[#allocation8 + $0x24] sm:$0xf]
    %v338 = vld [vmem:[#allocation8 + $0x28] sm:$0xf]
    %v339 = vld [vmem:[#allocation8 + $0x2c] sm:$0xf]
    %v340 = vld [vmem:[#allocation8 + $0x30] sm:$0xf]
    %v341 = vld [vmem:[#allocation8 + $0x34] sm:$0xf]
    %v342 = vld [vmem:[#allocation8 + $0x38] sm:$0xf]
    %v343 = vld [vmem:[#allocation8 + $0x3c] sm:$0xf]
    %v344 = vld [vmem:[#allocation10] sm:$0x1]
    %v345 = vlaneseq
    %v346 = vshrl.u32 %v345, 7
    %v347 = vsub.s32 0, %v346
    %v348 = vrot.slane %v344, %v347
    %v365 = vunpack.c.l.b16 %v328
    %v366 = vunpack.c.l.b16 %v329
    %v367 = vunpack.c.l.b16 %v330
    %v368 = vunpack.c.l.b16 %v331
    %v369 = vunpack.c.l.b16 %v332
    %v370 = vunpack.c.l.b16 %v333
    %v371 = vunpack.c.l.b16 %v334
    %v372 = vunpack.c.l.b16 %v335
    %v373 = vunpack.c.l.b16 %v336
    %v374 = vunpack.c.l.b16 %v337
    %v375 = vunpack.c.l.b16 %v338
    %v376 = vunpack.c.l.b16 %v339
    %v377 = vunpack.c.l.b16 %v340
    %v378 = vunpack.c.l.b16 %v341
    %v379 = vunpack.c.l.b16 %v342
    %v380 = vunpack.c.l.b16 %v343
    %v381 = vpack.c.b16 %v366, %v365
    %v382 = vpack.c.b16 %v368, %v367
    %v383 = vpack.c.b16 %v370, %v369
    %v384 = vpack.c.b16 %v372, %v371
    %v385 = vpack.c.b16 %v374, %v373
    %v386 = vpack.c.b16 %v376, %v375
    %v387 = vpack.c.b16 %v378, %v377
    %v388 = vpack.c.b16 %v380, %v379
    %397 = vmatprep.subr.bf16.mxu0 0
    %398 = vmatpush1.bf16.msra.mxu0 %v381
    %399 = vmatprep.subr.bf16.mxu0 0
    %400 = vmatpush1.bf16.msra.mxu0 %v382
    %401 = vmatprep.subr.bf16.mxu0 0
    %402 = vmatpush1.bf16.msra.mxu0 %v383
    %403 = vmatprep.subr.bf16.mxu0 0
    %404 = vmatpush1.bf16.msra.mxu0 %v384
    %405 = vmatprep.subr.bf16.mxu0 0
    %406 = vmatpush1.bf16.msra.mxu0 %v385
    %407 = vmatprep.subr.bf16.mxu0 0
    %408 = vmatpush1.bf16.msra.mxu0 %v386
    %409 = vmatprep.subr.bf16.mxu0 0
    %410 = vmatpush1.bf16.msra.mxu0 %v387
    %411 = vmatprep.subr.bf16.mxu0 0
    %412 = vmatpush1.bf16.msra.mxu0 %v388
    %413 = vmatprep.subr.bf16.mxu0 0
    %414 = vmatpush1.bf16.msra.mxu0 0
    %415 = vmatprep.subr.bf16.mxu0 0
    %416 = vmatpush1.bf16.msra.mxu0 0
    %417 = vmatprep.subr.bf16.mxu0 0
    %418 = vmatpush1.bf16.msra.mxu0 0
    %419 = vmatprep.subr.bf16.mxu0 0
    %420 = vmatpush1.bf16.msra.mxu0 0
    %421 = vmatprep.subr.bf16.mxu0 0
    %422 = vmatpush1.bf16.msra.mxu0 0
    %423 = vmatprep.subr.bf16.mxu0 0
    %424 = vmatpush1.bf16.msra.mxu0 0
    %425 = vmatprep.subr.bf16.mxu0 0
    %426 = vmatpush1.bf16.msra.mxu0 0
    %427 = vmatprep.subr.bf16.mxu0 0
    %428 = vmatpush1.bf16.msra.mxu0 0
    %429 = vmatprep.mubr.bf16.mxu0 0
    %430 = vmatmul.mubr.bf16.gmra.mrb[0].mxu0 %v327
    %v431 = vpop.f32.mrb[0].mxu0
    %v432 = vadd.f32 %v348, %v431
    %v433 = vpop.f32.mrb[0].mxu0
    %v434 = vpop.f32.mrb[0].mxu0
    %v435 = vadd.f32 %v348, %v434
    %v436 = vpop.f32.mrb[0].mxu0
    %437 = vdwg.mxu0
    %438 = vst [vmem:[#allocation11] sm:$0xff] %v432
    %439 = vst [vmem:[#allocation11 + $0x8] sm:$0xff] %v435
    // Predicated region
    $region50: #{tpu_custom_call.1} parent=1 // pred_check
      _
    $region51: #{tpu_custom_call.1} parent=1 // pred_check_branch
      %441 = sbr.rel (0) target = $region53
    $region52: #{tpu_custom_call.1} parent=1 // pred_region
      %s443 = ssub.s32 256, 256
      %444 = vsyncadd [#allocation4], %s443
      %s445 = sshll.u32 [#allocation11], 4
      %s446 = int_to_ptr.vmem [resolvable:$true] %s445
      %451 = dma.vmem_to_hbm [thread:$0]  %s446, 256, %s7, [#allocation4], 128, 128, 8
    $region53: #{tpu_custom_call.1} parent=1 // pred_fallthru
      _
    // Predicated region
    $region54: #{tpu_custom_call.1} parent=1 // pred_check
      _
    $region55: #{tpu_custom_call.1} parent=1 // pred_check_branch
      %453 = sbr.rel (0) target = $region57
    $region56: #{tpu_custom_call.1} parent=1 // pred_region
      %454 = dma.done [#allocation4], 256
    $region57: #{tpu_custom_call.1} parent=1 // pred_fallthru
      _
    %455 = vsyncpa [#allocation3], 1
    %456 = vsyncpa [#allocation6], 1
    %457 = vsyncpa [#allocation9], 1
    %458 = vsyncpa [#allocation4], 1

// kernel: tpu_custom_call.1
$region0: #{tpu_custom_call.1}
  #allocation0 [shape = 'u32[]', space=smem, size = 0x4, offset = 0x4, fixed_abs, tag = 'smem constant byte address 0x4 - core index']
  #allocation1 [shape = 'u32[144,128]{1,0:T(1,128)}', space=vmem, size = 0x12000, scoped, tag = 'internal scratch']
  %s0 = inlined_call_operand.hbm [shape: bf16[16,128], index: 0, kind: input, shape index: {}]
  %s1 = inlined_call_operand.hbm [shape: bf16[128,128], index: 1, kind: input, shape index: {}]
  %s2 = inlined_call_operand.hbm [shape: bf16[128,128], index: 2, kind: input, shape index: {}]
  %s3 = inlined_call_operand.hbm [shape: bf16[128,128], index: 3, kind: input, shape index: {}]
  %s4 = inlined_call_operand.vmem [shape: f32[8,128], index: 4, kind: input, shape index: {}]
  %s5 = inlined_call_operand.vmem [shape: f32[8,128], index: 5, kind: input, shape index: {}]
  %s6 = inlined_call_operand.hbm [shape: f32[8,128], index: 6, kind: input, shape index: {}]
  %s7 = inlined_call_operand.hbm [shape: f32[16,128], index: 7, kind: output, shape index: {}]
  %s8 = sld [smem:[#allocation0]]
  $region58: #{tpu_custom_call.1} parent=0
    _
  %s10 = ssub.s32 1, %s8
  %s11 = scalar_select 0, %s10, %s8
  $region1: #{tpu_custom_call.1} parent=0
    #allocation2 [shape = 'u8[4096]{0}', space=vmem, size = 0x1000, scoped, tag = 'input window, operand 0, single buffered']
    #allocation3 [shape = 's32[1]{0}', space=sflag, size = 0x4, scoped, tag = 'scoped memory for tpu_custom_call.1']
    #allocation4 [shape = 's32[1]{0}', space=sflag, size = 0x4, scoped, tag = 'scoped memory for tpu_custom_call.1']
    #allocation5 [shape = 'u8[32768]{0}', space=vmem, size = 0x8000, scoped, tag = 'input window, operand 1, single buffered']
    #allocation6 [shape = 's32[1]{0}', space=sflag, size = 0x4, scoped, tag = 'scoped memory for tpu_custom_call.1']
    #allocation7 [shape = 'u8[32768]{0}', space=vmem, size = 0x8000, scoped, tag = 'input window, operand 2, single buffered']
    #allocation8 [shape = 'u8[32768]{0}', space=vmem, size = 0x8000, scoped, tag = 'input window, operand 3, single buffered']
    #allocation9 [shape = 's32[1]{0}', space=sflag, size = 0x4, scoped, tag = 'scoped memory for tpu_custom_call.1']
    #allocation10 [shape = 'u8[4096]{0}', space=vmem, size = 0x1000, scoped, tag = 'input window, operand 6, single buffered']
    #allocation11 [shape = 'u8[8192]{0}', space=vmem, size = 0x2000, scoped, tag = 'output window, operand 0, single buffered']
    %12 = vsyncpa [#allocation3], 0
    %13 = vsyncpa [#allocation6], 0
    %14 = vsyncpa [#allocation9], 0
    %15 = vsyncpa [#allocation4], 0
    // Predicated region
    $region2: #{tpu_custom_call.1} parent=1 // pred_check
      _
    $region3: #{tpu_custom_call.1} parent=1 // pred_check_branch
      %17 = sbr.rel (0) target = $region5
    $region4: #{tpu_custom_call.1} parent=1 // pred_region
      %s19 = ssub.s32 128, 128
      %20 = vsyncadd [#allocation3], %s19
      %s21 = sshll.u32 [#allocation2], 4
      %s22 = int_to_ptr.vmem [resolvable:$true] %s21
      %27 = dma.hbm_to_vmem [thread:$0]  %s0, 128, %s22, [#allocation3], 64, 64, 4
    $region5: #{tpu_custom_call.1} parent=1 // pred_fallthru
      _
    // Predicated region
    $region6: #{tpu_custom_call.1} parent=1 // pred_check
      _
    $region7: #{tpu_custom_call.1} parent=1 // pred_check_branch
      %29 = sbr.rel (0) target = $region9
    $region8: #{tpu_custom_call.1} parent=1 // pred_region
      %s31 = ssub.s32 1024, 1024
      %32 = vsyncadd [#allocation6], %s31
      %s33 = sshll.u32 [#allocation5], 4
      %s34 = int_to_ptr.vmem [resolvable:$true] %s33
      %39 = dma.hbm_to_vmem [thread:$0]  %s1, 1024, %s34, [#allocation6], 64, 64, 4
    $region9: #{tpu_custom_call.1} parent=1 // pred_fallthru
      _
    // Predicated region
    $region10: #{tpu_custom_call.1} parent=1 // pred_check
      _
    $region11: #{tpu_custom_call.1} parent=1 // pred_check_branch
      %41 = sbr.rel (0) target = $region13
    $region12: #{tpu_custom_call.1} parent=1 // pred_region
      %s43 = ssub.s32 1024, 1024
      %44 = vsyncadd [#allocation6], %s43
      %s45 = sshll.u32 [#allocation7], 4
      %s46 = int_to_ptr.vmem [resolvable:$true] %s45
      %51 = dma.hbm_to_vmem [thread:$0]  %s2, 1024, %s46, [#allocation6], 64, 64, 4
    $region13: #{tpu_custom_call.1} parent=1 // pred_fallthru
      _
    // Predicated region
    $region14: #{tpu_custom_call.1} parent=1 // pred_check
      _
    $region15: #{tpu_custom_call.1} parent=1 // pred_check_branch
      %53 = sbr.rel (0) target = $region17
    $region16: #{tpu_custom_call.1} parent=1 // pred_region
      %s55 = ssub.s32 1024, 1024
      %56 = vsyncadd [#allocation9], %s55
      %s57 = sshll.u32 [#allocation8], 4
      %s58 = int_to_ptr.vmem [resolvable:$true] %s57
      %63 = dma.hbm_to_vmem [thread:$0]  %s3, 1024, %s58, [#allocation9], 64, 64, 4
    $region17: #{tpu_custom_call.1} parent=1 // pred_fallthru
      _
    // Predicated region
    $region18: #{tpu_custom_call.1} parent=1 // pred_check
      _
    $region19: #{tpu_custom_call.1} parent=1 // pred_check_branch
      %65 = sbr.rel (0) target = $region21
    $region20: #{tpu_custom_call.1} parent=1 // pred_region
      _
    $region21: #{tpu_custom_call.1} parent=1 // pred_fallthru
      _
    // Predicated region
    $region22: #{tpu_custom_call.1} parent=1 // pred_check
      _
    $region23: #{tpu_custom_call.1} parent=1 // pred_check_branch
      %67 = sbr.rel (0) target = $region25
    $region24: #{tpu_custom_call.1} parent=1 // pred_region
      _
    $region25: #{tpu_custom_call.1} parent=1 // pred_fallthru
      _
    // Predicated region
    $region26: #{tpu_custom_call.1} parent=1 // pred_check
      _
    $region27: #{tpu_custom_call.1} parent=1 // pred_check_branch
      %69 = sbr.rel (0) target = $region29
    $region28: #{tpu_custom_call.1} parent=1 // pred_region
      %s71 = ssub.s32 128, 128
      %72 = vsyncadd [#allocation9], %s71
      %s74 = sshll.u32 [#allocation10], 4
      %s75 = int_to_ptr.vmem [resolvable:$true] %s74
      %77 = dma.hbm_to_vmem [thread:$0]  %s6, 128, %s75, [#allocation9]
    $region29: #{tpu_custom_call.1} parent=1 // pred_fallthru
      _
    // Predicated region
    $region30: #{tpu_custom_call.1} parent=1 // pred_check
      _
    $region31: #{tpu_custom_call.1} parent=1 // pred_check_branch
      %79 = sbr.rel (0) target = $region33
    $region32: #{tpu_custom_call.1} parent=1 // pred_region
      %80 = dma.done [#allocation3], 128
    $region33: #{tpu_custom_call.1} parent=1 // pred_fallthru
      _
    // Predicated region
    $region34: #{tpu_custom_call.1} parent=1 // pred_check
      _
    $region35: #{tpu_custom_call.1} parent=1 // pred_check_branch
      %82 = sbr.rel (0) target = $region37
    $region36: #{tpu_custom_call.1} parent=1 // pred_region
      %83 = dma.done [#allocation6], 1024
    $region37: #{tpu_custom_call.1} parent=1 // pred_fallthru
      _
    // Predicated region
    $region38: #{tpu_custom_call.1} parent=1 // pred_check
      _
    $region39: #{tpu_custom_call.1} parent=1 // pred_check_branch
      %85 = sbr.rel (0) target = $region41
    $region40: #{tpu_custom_call.1} parent=1 // pred_region
      %86 = dma.done [#allocation6], 1024
    $region41: #{tpu_custom_call.1} parent=1 // pred_fallthru
      _
    // Predicated region
    $region42: #{tpu_custom_call.1} parent=1 // pred_check
      _
    $region43: #{tpu_custom_call.1} parent=1 // pred_check_branch
      %88 = sbr.rel (0) target = $region45
    $region44: #{tpu_custom_call.1} parent=1 // pred_region
      %89 = dma.done [#allocation9], 1024
    $region45: #{tpu_custom_call.1} parent=1 // pred_fallthru
      _
    // Predicated region
    $region46: #{tpu_custom_call.1} parent=1 // pred_check
      _
    $region47: #{tpu_custom_call.1} parent=1 // pred_check_branch
      %91 = sbr.rel (0) target = $region49
    $region48: #{tpu_custom_call.1} parent=1 // pred_region
      %92 = dma.done [#allocation9], 128
    $region49: #{tpu_custom_call.1} parent=1 // pred_fallthru
      _
    %v94 = vld [vmem:[#allocation2] sm:$0xf]
    %v95 = vld [vmem:[#allocation2 + $0x4] sm:$0xf]
    %v96 = vld [vmem:[#allocation5] sm:$0xf]
    %v97 = vld [vmem:[#allocation5 + $0x4] sm:$0xf]
    %v98 = vld [vmem:[#allocation5 + $0x8] sm:$0xf]
    %v99 = vld [vmem:[#allocation5 + $0xc] sm:$0xf]
    %v100 = vld [vmem:[#allocation5 + $0x10] sm:$0xf]
    %v101 = vld [vmem:[#allocation5 + $0x14] sm:$0xf]
    %v102 = vld [vmem:[#allocation5 + $0x18] sm:$0xf]
    %v103 = vld [vmem:[#allocation5 + $0x1c] sm:$0xf]
    %v104 = vld [vmem:[#allocation5 + $0x20] sm:$0xf]
    %v105 = vld [vmem:[#allocation5 + $0x24] sm:$0xf]
    %v106 = vld [vmem:[#allocation5 + $0x28] sm:$0xf]
    %v107 = vld [vmem:[#allocation5 + $0x2c] sm:$0xf]
    %v108 = vld [vmem:[#allocation5 + $0x30] sm:$0xf]
    %v109 = vld [vmem:[#allocation5 + $0x34] sm:$0xf]
    %v110 = vld [vmem:[#allocation5 + $0x38] sm:$0xf]
    %v111 = vld [vmem:[#allocation5 + $0x3c] sm:$0xf]
    %v112 = vld [vmem:[%s4] sm:$0x1]
    %v113 = vlaneseq
    %v114 = vshrl.u32 %v113, 7
    %v115 = vsub.s32 0, %v114
    %v116 = vrot.slane %v112, %v115
    %v119 = vunpack.c.l.b16 %v94
    %v120 = vunpack.c.l.b16 %v95
    %v121 = vpack.c.b16 %v120, %v119
    %v139 = vunpack.c.l.b16 %v96
    %v140 = vunpack.c.l.b16 %v97
    %v141 = vunpack.c.l.b16 %v98
    %v142 = vunpack.c.l.b16 %v99
    %v143 = vunpack.c.l.b16 %v100
    %v144 = vunpack.c.l.b16 %v101
    %v145 = vunpack.c.l.b16 %v102
    %v146 = vunpack.c.l.b16 %v103
    %v147 = vunpack.c.l.b16 %v104
    %v148 = vunpack.c.l.b16 %v105
    %v149 = vunpack.c.l.b16 %v106
    %v150 = vunpack.c.l.b16 %v107
    %v151 = vunpack.c.l.b16 %v108
    %v152 = vunpack.c.l.b16 %v109
    %v153 = vunpack.c.l.b16 %v110
    %v154 = vunpack.c.l.b16 %v111
    %v155 = vpack.c.b16 %v140, %v139
    %v156 = vpack.c.b16 %v142, %v141
    %v157 = vpack.c.b16 %v144, %v143
    %v158 = vpack.c.b16 %v146, %v145
    %v159 = vpack.c.b16 %v148, %v147
    %v160 = vpack.c.b16 %v150, %v149
    %v161 = vpack.c.b16 %v152, %v151
    %v162 = vpack.c.b16 %v154, %v153
    %171 = vmatprep.subr.bf16.mxu0 0
    %172 = vmatpush1.bf16.msra.mxu0 %v155
    %173 = vmatprep.subr.bf16.mxu0 0
    %174 = vmatpush1.bf16.msra.mxu0 %v156
    %175 = vmatprep.subr.bf16.mxu0 0
    %176 = vmatpush1.bf16.msra.mxu0 %v157
    %177 = vmatprep.subr.bf16.mxu0 0
    %178 = vmatpush1.bf16.msra.mxu0 %v158
    %179 = vmatprep.subr.bf16.mxu0 0
    %180 = vmatpush1.bf16.msra.mxu0 %v159
    %181 = vmatprep.subr.bf16.mxu0 0
    %182 = vmatpush1.bf16.msra.mxu0 %v160
    %183 = vmatprep.subr.bf16.mxu0 0
    %184 = vmatpush1.bf16.msra.mxu0 %v161
    %185 = vmatprep.subr.bf16.mxu0 0
    %186 = vmatpush1.bf16.msra.mxu0 %v162
    %187 = vmatprep.subr.bf16.mxu0 0
    %188 = vmatpush1.bf16.msra.mxu0 0
    %189 = vmatprep.subr.bf16.mxu0 0
    %190 = vmatpush1.bf16.msra.mxu0 0
    %191 = vmatprep.subr.bf16.mxu0 0
    %192 = vmatpush1.bf16.msra.mxu0 0
    %193 = vmatprep.subr.bf16.mxu0 0
    %194 = vmatpush1.bf16.msra.mxu0 0
    %195 = vmatprep.subr.bf16.mxu0 0
    %196 = vmatpush1.bf16.msra.mxu0 0
    %197 = vmatprep.subr.bf16.mxu0 0
    %198 = vmatpush1.bf16.msra.mxu0 0
    %199 = vmatprep.subr.bf16.mxu0 0
    %200 = vmatpush1.bf16.msra.mxu0 0
    %201 = vmatprep.subr.bf16.mxu0 0
    %202 = vmatpush1.bf16.msra.mxu0 0
    %203 = vmatprep.mubr.bf16.mxu0 0
    %204 = vmatmul.mubr.bf16.gmra.mrb[0].mxu0 %v121
    %v205 = vpop.f32.mrb[0].mxu0
    %v206 = vadd.f32 %v116, %v205
    %v207 = vpop.f32.mrb[0].mxu0
    %v208 = vpop.f32.mrb[0].mxu0
    %v209 = vadd.f32 %v116, %v208
    %v210 = vpop.f32.mrb[0].mxu0
    %211 = vdwg.mxu0
    %v212 = vmax.f32 %v206, 0.0
    %v213 = vmax.f32 %v209, 0.0
    %v214 = vpack.c.bf16 %v213, %v212
    %v215 = vld [vmem:[#allocation7] sm:$0xf]
    %v216 = vld [vmem:[#allocation7 + $0x4] sm:$0xf]
    %v217 = vld [vmem:[#allocation7 + $0x8] sm:$0xf]
    %v218 = vld [vmem:[#allocation7 + $0xc] sm:$0xf]
    %v219 = vld [vmem:[#allocation7 + $0x10] sm:$0xf]
    %v220 = vld [vmem:[#allocation7 + $0x14] sm:$0xf]
    %v221 = vld [vmem:[#allocation7 + $0x18] sm:$0xf]
    %v222 = vld [vmem:[#allocation7 + $0x1c] sm:$0xf]
    %v223 = vld [vmem:[#allocation7 + $0x20] sm:$0xf]
    %v224 = vld [vmem:[#allocation7 + $0x24] sm:$0xf]
    %v225 = vld [vmem:[#allocation7 + $0x28] sm:$0xf]
    %v226 = vld [vmem:[#allocation7 + $0x2c] sm:$0xf]
    %v227 = vld [vmem:[#allocation7 + $0x30] sm:$0xf]
    %v228 = vld [vmem:[#allocation7 + $0x34] sm:$0xf]
    %v229 = vld [vmem:[#allocation7 + $0x38] sm:$0xf]
    %v230 = vld [vmem:[#allocation7 + $0x3c] sm:$0xf]
    %v231 = vld [vmem:[%s5] sm:$0x1]
    %v232 = vlaneseq
    %v233 = vshrl.u32 %v232, 7
    %v234 = vsub.s32 0, %v233
    %v235 = vrot.slane %v231, %v234
    %v252 = vunpack.c.l.b16 %v215
    %v253 = vunpack.c.l.b16 %v216
    %v254 = vunpack.c.l.b16 %v217
    %v255 = vunpack.c.l.b16 %v218
    %v256 = vunpack.c.l.b16 %v219
    %v257 = vunpack.c.l.b16 %v220
    %v258 = vunpack.c.l.b16 %v221
    %v259 = vunpack.c.l.b16 %v222
    %v260 = vunpack.c.l.b16 %v223
    %v261 = vunpack.c.l.b16 %v224
    %v262 = vunpack.c.l.b16 %v225
    %v263 = vunpack.c.l.b16 %v226
    %v264 = vunpack.c.l.b16 %v227
    %v265 = vunpack.c.l.b16 %v228
    %v266 = vunpack.c.l.b16 %v229
    %v267 = vunpack.c.l.b16 %v230
    %v268 = vpack.c.b16 %v253, %v252
    %v269 = vpack.c.b16 %v255, %v254
    %v270 = vpack.c.b16 %v257, %v256
    %v271 = vpack.c.b16 %v259, %v258
    %v272 = vpack.c.b16 %v261, %v260
    %v273 = vpack.c.b16 %v263, %v262
    %v274 = vpack.c.b16 %v265, %v264
    %v275 = vpack.c.b16 %v267, %v266
    %284 = vmatprep.subr.bf16.mxu0 0
    %285 = vmatpush1.bf16.msra.mxu0 %v268
    %286 = vmatprep.subr.bf16.mxu0 0
    %287 = vmatpush1.bf16.msra.mxu0 %v269
    %288 = vmatprep.subr.bf16.mxu0 0
    %289 = vmatpush1.bf16.msra.mxu0 %v270
    %290 = vmatprep.subr.bf16.mxu0 0
    %291 = vmatpush1.bf16.msra.mxu0 %v271
    %292 = vmatprep.subr.bf16.mxu0 0
    %293 = vmatpush1.bf16.msra.mxu0 %v272
    %294 = vmatprep.subr.bf16.mxu0 0
    %295 = vmatpush1.bf16.msra.mxu0 %v273
    %296 = vmatprep.subr.bf16.mxu0 0
    %297 = vmatpush1.bf16.msra.mxu0 %v274
    %298 = vmatprep.subr.bf16.mxu0 0
    %299 = vmatpush1.bf16.msra.mxu0 %v275
    %300 = vmatprep.subr.bf16.mxu0 0
    %301 = vmatpush1.bf16.msra.mxu0 0
    %302 = vmatprep.subr.bf16.mxu0 0
    %303 = vmatpush1.bf16.msra.mxu0 0
    %304 = vmatprep.subr.bf16.mxu0 0
    %305 = vmatpush1.bf16.msra.mxu0 0
    %306 = vmatprep.subr.bf16.mxu0 0
    %307 = vmatpush1.bf16.msra.mxu0 0
    %308 = vmatprep.subr.bf16.mxu0 0
    %309 = vmatpush1.bf16.msra.mxu0 0
    %310 = vmatprep.subr.bf16.mxu0 0
    %311 = vmatpush1.bf16.msra.mxu0 0
    %312 = vmatprep.subr.bf16.mxu0 0
    %313 = vmatpush1.bf16.msra.mxu0 0
    %314 = vmatprep.subr.bf16.mxu0 0
    %315 = vmatpush1.bf16.msra.mxu0 0
    %316 = vmatprep.mubr.bf16.mxu0 0
    %317 = vmatmul.mubr.bf16.gmra.mrb[0].mxu0 %v214
    %v318 = vpop.f32.mrb[0].mxu0
    %v319 = vadd.f32 %v235, %v318
    %v320 = vpop.f32.mrb[0].mxu0
    %v321 = vpop.f32.mrb[0].mxu0
    %v322 = vadd.f32 %v235, %v321
    %v323 = vpop.f32.mrb[0].mxu0
    %324 = vdwg.mxu0
    %v325 = vmax.f32 %v319, 0.0
    %v326 = vmax.f32 %v322, 0.0
    %v327 = vpack.c.bf16 %v326, %v325
    %v328 = vld [vmem:[#allocation8] sm:$0xf]
    %v329 = vld [vmem:[#allocation8 + $0x4] sm:$0xf]
    %v330 = vld [vmem:[#allocation8 + $0x8] sm:$0xf]
    %v331 = vld [vmem:[#allocation8 + $0xc] sm:$0xf]
    %v332 = vld [vmem:[#allocation8 + $0x10] sm:$0xf]
    %v333 = vld [vmem:[#allocation8 + $0x14] sm:$0xf]
    %v334 = vld [vmem:[#allocation8 + $0x18] sm:$0xf]
    %v335 = vld [vmem:[#allocation8 + $0x1c] sm:$0xf]
    %v336 = vld [vmem:[#allocation8 + $0x20] sm:$0xf]
    %v337 = vld [vmem:[#allocation8 + $0x24] sm:$0xf]
    %v338 = vld [vmem:[#allocation8 + $0x28] sm:$0xf]
    %v339 = vld [vmem:[#allocation8 + $0x2c] sm:$0xf]
    %v340 = vld [vmem:[#allocation8 + $0x30] sm:$0xf]
    %v341 = vld [vmem:[#allocation8 + $0x34] sm:$0xf]
    %v342 = vld [vmem:[#allocation8 + $0x38] sm:$0xf]
    %v343 = vld [vmem:[#allocation8 + $0x3c] sm:$0xf]
    %v344 = vld [vmem:[#allocation10] sm:$0x1]
    %v345 = vlaneseq
    %v346 = vshrl.u32 %v345, 7
    %v347 = vsub.s32 0, %v346
    %v348 = vrot.slane %v344, %v347
    %v365 = vunpack.c.l.b16 %v328
    %v366 = vunpack.c.l.b16 %v329
    %v367 = vunpack.c.l.b16 %v330
    %v368 = vunpack.c.l.b16 %v331
    %v369 = vunpack.c.l.b16 %v332
    %v370 = vunpack.c.l.b16 %v333
    %v371 = vunpack.c.l.b16 %v334
    %v372 = vunpack.c.l.b16 %v335
    %v373 = vunpack.c.l.b16 %v336
    %v374 = vunpack.c.l.b16 %v337
    %v375 = vunpack.c.l.b16 %v338
    %v376 = vunpack.c.l.b16 %v339
    %v377 = vunpack.c.l.b16 %v340
    %v378 = vunpack.c.l.b16 %v341
    %v379 = vunpack.c.l.b16 %v342
    %v380 = vunpack.c.l.b16 %v343
    %v381 = vpack.c.b16 %v366, %v365
    %v382 = vpack.c.b16 %v368, %v367
    %v383 = vpack.c.b16 %v370, %v369
    %v384 = vpack.c.b16 %v372, %v371
    %v385 = vpack.c.b16 %v374, %v373
    %v386 = vpack.c.b16 %v376, %v375
    %v387 = vpack.c.b16 %v378, %v377
    %v388 = vpack.c.b16 %v380, %v379
    %397 = vmatprep.subr.bf16.mxu0 0
    %398 = vmatpush1.bf16.msra.mxu0 %v381
    %399 = vmatprep.subr.bf16.mxu0 0
    %400 = vmatpush1.bf16.msra.mxu0 %v382
    %401 = vmatprep.subr.bf16.mxu0 0
    %402 = vmatpush1.bf16.msra.mxu0 %v383
    %403 = vmatprep.subr.bf16.mxu0 0
    %404 = vmatpush1.bf16.msra.mxu0 %v384
    %405 = vmatprep.subr.bf16.mxu0 0
    %406 = vmatpush1.bf16.msra.mxu0 %v385
    %407 = vmatprep.subr.bf16.mxu0 0
    %408 = vmatpush1.bf16.msra.mxu0 %v386
    %409 = vmatprep.subr.bf16.mxu0 0
    %410 = vmatpush1.bf16.msra.mxu0 %v387
    %411 = vmatprep.subr.bf16.mxu0 0
    %412 = vmatpush1.bf16.msra.mxu0 %v388
    %413 = vmatprep.subr.bf16.mxu0 0
    %414 = vmatpush1.bf16.msra.mxu0 0
    %415 = vmatprep.subr.bf16.mxu0 0
    %416 = vmatpush1.bf16.msra.mxu0 0
    %417 = vmatprep.subr.bf16.mxu0 0
    %418 = vmatpush1.bf16.msra.mxu0 0
    %419 = vmatprep.subr.bf16.mxu0 0
    %420 = vmatpush1.bf16.msra.mxu0 0
    %421 = vmatprep.subr.bf16.mxu0 0
    %422 = vmatpush1.bf16.msra.mxu0 0
    %423 = vmatprep.subr.bf16.mxu0 0
    %424 = vmatpush1.bf16.msra.mxu0 0
    %425 = vmatprep.subr.bf16.mxu0 0
    %426 = vmatpush1.bf16.msra.mxu0 0
    %427 = vmatprep.subr.bf16.mxu0 0
    %428 = vmatpush1.bf16.msra.mxu0 0
    %429 = vmatprep.mubr.bf16.mxu0 0
    %430 = vmatmul.mubr.bf16.gmra.mrb[0].mxu0 %v327
    %v431 = vpop.f32.mrb[0].mxu0
    %v432 = vadd.f32 %v348, %v431
    %v433 = vpop.f32.mrb[0].mxu0
    %v434 = vpop.f32.mrb[0].mxu0
    %v435 = vadd.f32 %v348, %v434
    %v436 = vpop.f32.mrb[0].mxu0
    %437 = vdwg.mxu0
    %438 = vst [vmem:[#allocation11] sm:$0xff] %v432
    %439 = vst [vmem:[#allocation11 + $0x8] sm:$0xff] %v435
    // Predicated region
    $region50: #{tpu_custom_call.1} parent=1 // pred_check
      _
    $region51: #{tpu_custom_call.1} parent=1 // pred_check_branch
      %441 = sbr.rel (0) target = $region53
    $region52: #{tpu_custom_call.1} parent=1 // pred_region
      %s443 = ssub.s32 256, 256
      %444 = vsyncadd [#allocation4], %s443
      %s445 = sshll.u32 [#allocation11], 4
      %s446 = int_to_ptr.vmem [resolvable:$true] %s445
      %451 = dma.vmem_to_hbm [thread:$0]  %s446, 256, %s7, [#allocation4], 128, 128, 8
    $region53: #{tpu_custom_call.1} parent=1 // pred_fallthru
      _
    // Predicated region
    $region54: #{tpu_custom_call.1} parent=1 // pred_check
      _
    $region55: #{tpu_custom_call.1} parent=1 // pred_check_branch
      %453 = sbr.rel (0) target = $region57
    $region56: #{tpu_custom_call.1} parent=1 // pred_region
      %454 = dma.done [#allocation4], 256
    $region57: #{tpu_custom_call.1} parent=1 // pred_fallthru
      _
    %455 = vsyncpa [#allocation3], 1
    %456 = vsyncpa [#allocation6], 1
    %457 = vsyncpa [#allocation9], 1
    %458 = vsyncpa [#allocation4], 1

</llo_original>
